<compile_context>
chip_gen: v5e
topology: v5e:2x2
jax: 0.10.0
libtpu: 0.0.40
codegen_flags: <defaults>
</compile_context>

<pallas_src>
import jax
import jax.numpy as jnp
from jax.experimental import pallas as pl
from jax.experimental.pallas import tpu as pltpu

LOG_STD_MIN = -20.0
LOG_STD_MAX = 2.0


def gaussian_policy_kernel(x_ref, w1_ref, b1_ref, w2_ref, b2_ref,
                           wh_ref, bh_ref, out_ref):
    """One batch tile: 3 MXU matmuls (heads fused) + VPU relu/clip/select + EUP exp.

    MXU operands are cast to the weight dtype (bf16 weights -> native bf16 MXU
    path on v6e/v7x, no-op for f32); bias add / relu / clip / exp / select stay
    in f32 (v5e has no bf16 VALU/EUP).  Weights/biases are the same
    VMEM-resident block at every grid step (constant index_map, single buffer).
    """
    mxu_dtype = w1_ref.dtype

    x = x_ref[...].astype(mxu_dtype)
    h1 = jnp.dot(x, w1_ref[...], preferred_element_type=jnp.float32)
    h1 = jnp.maximum(h1 + b1_ref[...].astype(jnp.float32), 0.0)

    h2 = jnp.dot(h1.astype(mxu_dtype), w2_ref[...],
                 preferred_element_type=jnp.float32)
    h2 = jnp.maximum(h2 + b2_ref[...].astype(jnp.float32), 0.0)

    # Fused heads: columns [0, A) -> mean, [A, 2A) -> std = exp(clip(log_std)).
    head = jnp.dot(h2.astype(mxu_dtype), wh_ref[...],
                   preferred_element_type=jnp.float32)
    head = head + bh_ref[...].astype(jnp.float32)

    two_a = out_ref.shape[-1]
    col = jax.lax.broadcasted_iota(jnp.int32, head.shape, dimension=1)
    is_std_col = col >= (two_a // 2)
    # clip bounds exp's argument by 2, so it is safe to evaluate lane-wide and
    # select; keeps everything vreg-dense (no narrow slices in-kernel).
    clipped = jnp.clip(head, LOG_STD_MIN, LOG_STD_MAX)
    out_ref[...] = jnp.where(is_std_col, jnp.exp(clipped), head)


def _round_up(x, m):
    return ((x + m - 1) // m) * m


def gaussian_policy_forward(state, params, *, block_batch=2048,
                            vmem_budget_bytes=48 * 1024 * 1024,
                            return_packed=False):
    """state: [B, state_dim] f32. Returns (mean, std), each [B, action_dim] f32.

    return_packed=True returns the fused [B, 2*action_dim] slab (mean | std)
    so a downstream consumer (e.g. the sampler) can skip the two output slices.
    """
    B, state_dim = state.shape
    hidden = params["w1"].shape[1]
    two_a = params["w_heads"].shape[1]
    action_dim = two_a // 2

    weight_bytes = sum(int(p.size) * p.dtype.itemsize for p in params.values())

    # --- Batch-tile selection (VMEM budgeted, v7x 64 MiB is the binding case) --
    # Per-row VMEM per grid step: double-buffered f32 state/output tiles plus
    # f32 h1/h2 temporaries; x1.5 headroom for bf16 matmul copies / compiler temps.
    per_row = int((2 * 4 * (state_dim + two_a) + 2 * 4 * hidden) * 1.5)
    avail = max(vmem_budget_bytes - 2 * weight_bytes, 1 << 20)
    tb_cap = max(8, (avail // per_row) // 8 * 8)
    tb = min(block_batch, tb_cap)

    if B <= tb:
        if B >= 256:
            # Keep >=2 grid steps so the "parallel" batch axis can shard across
            # both TensorCores on v7x (no-op on single-TC v5e/v6e).
            tb = max(8, _round_up(pl.cdiv(B, 2), 8))
        else:
            tb = B
    # No jnp.pad / output slice: Pallas masks the ragged last block.
    grid = (pl.cdiv(B, tb),)

    cost = pl.CostEstimate(
        flops=2 * B * (state_dim * hidden + hidden * hidden + hidden * two_a),
        transcendentals=B * two_a,
        bytes_accessed=4 * B * (state_dim + two_a) + weight_bytes,
    )
    vmem_limit = int(min(64 * 1024 * 1024,
                         max(32 * 1024 * 1024,
                             1.25 * (2 * weight_bytes + tb * per_row))))

    batch_tile = lambda i: (i, 0)   # walks the batch axis
    pinned = lambda i: (0, 0)       # constant block -> weights stay VMEM-resident

    def run(single_buffer_weights):
        pinned_kwargs = (dict(pipeline_mode=pl.Buffered(1))
                         if single_buffer_weights else {})
        return pl.pallas_call(
            gaussian_policy_kernel,
            out_shape=jax.ShapeDtypeStruct((B, two_a), jnp.float32),
            grid=grid,
            in_specs=[
                pl.BlockSpec((tb, state_dim), batch_tile),
                pl.BlockSpec(params["w1"].shape, pinned, **pinned_kwargs),
                pl.BlockSpec(params["b1"].shape, pinned, **pinned_kwargs),
                pl.BlockSpec(params["w2"].shape, pinned, **pinned_kwargs),
                pl.BlockSpec(params["b2"].shape, pinned, **pinned_kwargs),
                pl.BlockSpec(params["w_heads"].shape, pinned, **pinned_kwargs),
                pl.BlockSpec(params["b_heads"].shape, pinned, **pinned_kwargs),
            ],
            out_specs=pl.BlockSpec((tb, two_a), batch_tile),
            compiler_params=pltpu.CompilerParams(
                dimension_semantics=("parallel",),
                vmem_limit_bytes=vmem_limit),
            cost_estimate=cost,
        )(state, params["w1"], params["b1"], params["w2"], params["b2"],
          params["w_heads"], params["b_heads"])

    try:
        packed = run(single_buffer_weights=True)
    except Exception:
        # Fallback for JAX versions without BlockSpec pipeline_mode support;
        # identical semantics, just double-buffers the pinned weights.
        packed = run(single_buffer_weights=False)

    if return_packed:
        return packed
    return packed[:, :action_dim], packed[:, action_dim:]


def init_params(key, state_dim, action_dim, hidden_dim, dtype=jnp.float32):
    """Deterministic init mimicking nn.Linear's U(-1/sqrt(fan_in), 1/sqrt(fan_in)).

    Weights stored as [in, out] (transposed vs PyTorch's [out, in]); the two head
    layers are packed into one [hidden, 2*action_dim] weight / [1, 2*action_dim]
    bias.  Pass dtype=jnp.bfloat16 on v6e/v7x to halve weight HBM/VMEM traffic
    and hit the native bf16 MXU path."""
    ks = jax.random.split(key, 8)

    def linear(kw, kb, fan_in, fan_out):
        bound = 1.0 / jnp.sqrt(fan_in)
        w = jax.random.uniform(kw, (fan_in, fan_out), jnp.float32, -bound, bound)
        b = jax.random.uniform(kb, (1, fan_out), jnp.float32, -bound, bound)
        return w.astype(dtype), b.astype(dtype)

    w1, b1 = linear(ks[0], ks[1], state_dim, hidden_dim)
    w2, b2 = linear(ks[2], ks[3], hidden_dim, hidden_dim)
    wm, bm = linear(ks[4], ks[5], hidden_dim, action_dim)
    ws, bs = linear(ks[6], ks[7], hidden_dim, action_dim)
    return {"w1": w1, "b1": b1, "w2": w2, "b2": b2,
            "w_heads": jnp.concatenate([wm, ws], axis=1),
            "b_heads": jnp.concatenate([bm, bs], axis=1)}


def reference_forward(state, params):
    p = jax.tree_util.tree_map(lambda a: a.astype(jnp.float32), params)
    h1 = jnp.maximum(state @ p["w1"] + p["b1"], 0.0)
    h2 = jnp.maximum(h1 @ p["w2"] + p["b2"], 0.0)
    head = h2 @ p["w_heads"] + p["b_heads"]
    a = head.shape[-1] // 2
    mean = head[:, :a]
    log_std = jnp.clip(head[:, a:], LOG_STD_MIN, LOG_STD_MAX)
    return mean, jnp.exp(log_std)


if __name__ == "__main__":
    key = jax.random.PRNGKey(0)
    k_param, k_state1, k_state2, k_state3 = jax.random.split(key, 4)

    batch, state_dim, action_dim, hidden_dim = 8, 16, 4, 32
    params = init_params(k_param, state_dim, action_dim, hidden_dim)

    # --- single-block path (small batch, f32) ---
    state = jax.random.normal(k_state1, (batch, state_dim), jnp.float32)
    mean, std = gaussian_policy_forward(state, params)
    jax.block_until_ready((mean, std))

    mean_ref, std_ref = reference_forward(state, params)
    assert mean.shape == (batch, action_dim) and std.shape == (batch, action_dim)
    assert jnp.allclose(mean, mean_ref, atol=1e-5), "mean mismatch (single block)"
    assert jnp.allclose(std, std_ref, atol=1e-5), "std mismatch (single block)"
    assert bool(jnp.all(std > 0))

    # --- multi-step grid path with ragged (un-padded) last block ---
    big_batch = 20
    state_big = jax.random.normal(k_state2, (big_batch, state_dim), jnp.float32)
    mean_b, std_b = gaussian_policy_forward(state_big, params, block_batch=8)
    jax.block_until_ready((mean_b, std_b))

    mean_b_ref, std_b_ref = reference_forward(state_big, params)
    assert mean_b.shape == (big_batch, action_dim)
    assert jnp.allclose(mean_b, mean_b_ref, atol=1e-5), "mean mismatch (tiled grid)"
    assert jnp.allclose(std_b, std_b_ref, atol=1e-5), "std mismatch (tiled grid)"

    # --- mid-size batch: >=2 grid steps (v7x 2-TC sharding) + ragged tail ---
    mid_batch = 300
    state_mid = jax.random.normal(k_state3, (mid_batch, state_dim), jnp.float32)
    mean_m, std_m = gaussian_policy_forward(state_mid, params)
    jax.block_until_ready((mean_m, std_m))
    mean_m_ref, std_m_ref = reference_forward(state_mid, params)
    assert jnp.allclose(mean_m, mean_m_ref, atol=1e-5), "mean mismatch (mid batch)"
    assert jnp.allclose(std_m, std_m_ref, atol=1e-5), "std mismatch (mid batch)"

    # --- bf16 weights path (native bf16 MXU operands, f32 elementwise) ---
    params_bf16 = init_params(k_param, state_dim, action_dim, hidden_dim,
                              dtype=jnp.bfloat16)
    mean_h, std_h = gaussian_policy_forward(state, params_bf16)
    jax.block_until_ready((mean_h, std_h))
    mean_h_ref, std_h_ref = reference_forward(state, params_bf16)
    assert mean_h.dtype == jnp.float32 and std_h.dtype == jnp.float32
    assert jnp.allclose(mean_h, mean_h_ref, atol=5e-2, rtol=5e-2), \
        "mean mismatch (bf16 weights)"
    assert jnp.allclose(std_h, std_h_ref, atol=5e-2, rtol=5e-2), \
        "std mismatch (bf16 weights)"

    # TODO(synk): GaussianPolicy.sample() (rsample + tanh + log_prob) is stochastic
    # host-side glue on top of forward() and is not implemented as a kernel here.

    print("KERNEL_OK")
</pallas_src>

<mosaic_0001>
module attributes {stable_mosaic.version = 11 : i64} {
  func.func @gaussian_policy_kernel(%arg0: i32, %arg1: memref<8x16xf32, #tpu.memory_space<vmem>>, %arg2: memref<16x32xf32, #tpu.memory_space<vmem>>, %arg3: memref<1x32xf32, #tpu.memory_space<vmem>>, %arg4: memref<32x32xf32, #tpu.memory_space<vmem>>, %arg5: memref<1x32xf32, #tpu.memory_space<vmem>>, %arg6: memref<32x8xf32, #tpu.memory_space<vmem>>, %arg7: memref<1x8xf32, #tpu.memory_space<vmem>>, %arg8: memref<8x8xf32, #tpu.memory_space<vmem>>) attributes {dimension_semantics = [#tpu.dimension_semantics<parallel>], iteration_bounds = array<i64: 1>, scalar_prefetch = 0 : i64, scratch_operands = 0 : i64, tpu.core_type = #tpu.core_type<tc>, window_params = [{transform_indices = @transform_0, window_bounds = array<i64: 8, 16>}, {pipeline_mode = #tpu.pipeline_mode<synchronous>, transform_indices = @transform_1, window_bounds = array<i64: 16, 32>}, {pipeline_mode = #tpu.pipeline_mode<synchronous>, transform_indices = @transform_2, window_bounds = array<i64: 1, 32>}, {pipeline_mode = #tpu.pipeline_mode<synchronous>, transform_indices = @transform_3, window_bounds = array<i64: 32, 32>}, {pipeline_mode = #tpu.pipeline_mode<synchronous>, transform_indices = @transform_4, window_bounds = array<i64: 1, 32>}, {pipeline_mode = #tpu.pipeline_mode<synchronous>, transform_indices = @transform_5, window_bounds = array<i64: 32, 8>}, {pipeline_mode = #tpu.pipeline_mode<synchronous>, transform_indices = @transform_6, window_bounds = array<i64: 1, 8>}, {transform_indices = @transform_7, window_bounds = array<i64: 8, 8>}]} {
    %c0 = arith.constant 0 : index
    %c0_0 = arith.constant 0 : index
    %0 = vector.load %arg1[%c0, %c0_0] : memref<8x16xf32, #tpu.memory_space<vmem>>, vector<8x16xf32>
    %c0_1 = arith.constant 0 : index
    %c0_2 = arith.constant 0 : index
    %1 = vector.load %arg2[%c0_1, %c0_2] : memref<16x32xf32, #tpu.memory_space<vmem>>, vector<16x32xf32>
    %cst = arith.constant dense<0.000000e+00> : vector<8x32xf32>
    %2 = tpu.matmul %0, %1, %cst {dimension_numbers = #tpu.dot_dimension_numbers<[1], [0], [0], [1], [0, 0, 1, 1], [], []>} : vector<8x16xf32>, vector<16x32xf32>, vector<8x32xf32> -> vector<8x32xf32>
    %c0_3 = arith.constant 0 : index
    %c0_4 = arith.constant 0 : index
    %3 = vector.load %arg3[%c0_3, %c0_4] : memref<1x32xf32, #tpu.memory_space<vmem>>, vector<1x32xf32>
    %4 = vector.broadcast %3 : vector<1x32xf32> to vector<8x32xf32>
    %5 = arith.addf %2, %4 : vector<8x32xf32>
    %cst_5 = arith.constant 0.000000e+00 : f32
    %6 = vector.broadcast %cst_5 : f32 to vector<8x32xf32>
    %7 = arith.maximumf %5, %6 : vector<8x32xf32>
    %c0_6 = arith.constant 0 : index
    %c0_7 = arith.constant 0 : index
    %8 = vector.load %arg4[%c0_6, %c0_7] : memref<32x32xf32, #tpu.memory_space<vmem>>, vector<32x32xf32>
    %cst_8 = arith.constant dense<0.000000e+00> : vector<8x32xf32>
    %9 = tpu.matmul %7, %8, %cst_8 {dimension_numbers = #tpu.dot_dimension_numbers<[1], [0], [0], [1], [0, 0, 1, 1], [], []>} : vector<8x32xf32>, vector<32x32xf32>, vector<8x32xf32> -> vector<8x32xf32>
    %c0_9 = arith.constant 0 : index
    %c0_10 = arith.constant 0 : index
    %10 = vector.load %arg5[%c0_9, %c0_10] : memref<1x32xf32, #tpu.memory_space<vmem>>, vector<1x32xf32>
    %11 = vector.broadcast %10 : vector<1x32xf32> to vector<8x32xf32>
    %12 = arith.addf %9, %11 : vector<8x32xf32>
    %cst_11 = arith.constant 0.000000e+00 : f32
    %13 = vector.broadcast %cst_11 : f32 to vector<8x32xf32>
    %14 = arith.maximumf %12, %13 : vector<8x32xf32>
    %c0_12 = arith.constant 0 : index
    %c0_13 = arith.constant 0 : index
    %15 = vector.load %arg6[%c0_12, %c0_13] : memref<32x8xf32, #tpu.memory_space<vmem>>, vector<32x8xf32>
    %cst_14 = arith.constant dense<0.000000e+00> : vector<8x8xf32>
    %16 = tpu.matmul %14, %15, %cst_14 {dimension_numbers = #tpu.dot_dimension_numbers<[1], [0], [0], [1], [0, 0, 1, 1], [], []>} : vector<8x32xf32>, vector<32x8xf32>, vector<8x8xf32> -> vector<8x8xf32>
    %c0_15 = arith.constant 0 : index
    %c0_16 = arith.constant 0 : index
    %17 = vector.load %arg7[%c0_15, %c0_16] : memref<1x8xf32, #tpu.memory_space<vmem>>, vector<1x8xf32>
    %18 = vector.broadcast %17 : vector<1x8xf32> to vector<8x8xf32>
    %19 = arith.addf %16, %18 : vector<8x8xf32>
    %20 = tpu.iota {dimensions = array<i32: 1>} : vector<8x8xi32>
    %c4_i32 = arith.constant 4 : i32
    %21 = vector.broadcast %c4_i32 : i32 to vector<8x8xi32>
    %22 = arith.cmpi sge, %20, %21 : vector<8x8xi32>
    %cst_17 = arith.constant -2.000000e+01 : f32
    %cst_18 = arith.constant 2.000000e+00 : f32
    %23 = vector.broadcast %cst_17 : f32 to vector<8x8xf32>
    %24 = arith.maximumf %23, %19 : vector<8x8xf32>
    %25 = vector.broadcast %cst_18 : f32 to vector<8x8xf32>
    %26 = arith.minimumf %25, %24 : vector<8x8xf32>
    %27 = math.exp %26 : vector<8x8xf32>
    %28 = arith.select %22, %27, %19 : vector<8x8xi1>, vector<8x8xf32>
    %c0_19 = arith.constant 0 : index
    %c0_20 = arith.constant 0 : index
    %29 = vector.load %arg8[%c0_19, %c0_20] : memref<8x8xf32, #tpu.memory_space<vmem>>, vector<8x8xf32>
    tpu.vector_store %arg8[%c0_19, %c0_20], %28 {strides = array<i32>} : memref<8x8xf32, #tpu.memory_space<vmem>>, vector<8x8xf32>,
    return
  }
  func.func @transform_0(%arg0: i32) -> (i32, i32) {
    %c0_i32 = arith.constant 0 : i32
    %c0_i32_0 = arith.constant 0 : i32
    return %arg0, %c0_i32 : i32, i32
  }
  func.func @transform_1(%arg0: i32) -> (i32, i32) {
    %c0_i32 = arith.constant 0 : i32
    %c0_i32_0 = arith.constant 0 : i32
    %c0_i32_1 = arith.constant 0 : i32
    return %c0_i32, %c0_i32_0 : i32, i32
  }
  func.func @transform_2(%arg0: i32) -> (i32, i32) {
    %c0_i32 = arith.constant 0 : i32
    %c0_i32_0 = arith.constant 0 : i32
    %c0_i32_1 = arith.constant 0 : i32
    return %c0_i32, %c0_i32_0 : i32, i32
  }
  func.func @transform_3(%arg0: i32) -> (i32, i32) {
    %c0_i32 = arith.constant 0 : i32
    %c0_i32_0 = arith.constant 0 : i32
    %c0_i32_1 = arith.constant 0 : i32
    return %c0_i32, %c0_i32_0 : i32, i32
  }
  func.func @transform_4(%arg0: i32) -> (i32, i32) {
    %c0_i32 = arith.constant 0 : i32
    %c0_i32_0 = arith.constant 0 : i32
    %c0_i32_1 = arith.constant 0 : i32
    return %c0_i32, %c0_i32_0 : i32, i32
  }
  func.func @transform_5(%arg0: i32) -> (i32, i32) {
    %c0_i32 = arith.constant 0 : i32
    %c0_i32_0 = arith.constant 0 : i32
    %c0_i32_1 = arith.constant 0 : i32
    return %c0_i32, %c0_i32_0 : i32, i32
  }
  func.func @transform_6(%arg0: i32) -> (i32, i32) {
    %c0_i32 = arith.constant 0 : i32
    %c0_i32_0 = arith.constant 0 : i32
    %c0_i32_1 = arith.constant 0 : i32
    return %c0_i32, %c0_i32_0 : i32, i32
  }
  func.func @transform_7(%arg0: i32) -> (i32, i32) {
    %c0_i32 = arith.constant 0 : i32
    %c0_i32_0 = arith.constant 0 : i32
    return %arg0, %c0_i32 : i32, i32
  }
}

module attributes {stable_mosaic.version = 11 : i64} {
  func.func @gaussian_policy_kernel(%arg0: i32, %arg1: memref<8x16xf32, #tpu.memory_space<vmem>>, %arg2: memref<16x32xf32, #tpu.memory_space<vmem>>, %arg3: memref<1x32xf32, #tpu.memory_space<vmem>>, %arg4: memref<32x32xf32, #tpu.memory_space<vmem>>, %arg5: memref<1x32xf32, #tpu.memory_space<vmem>>, %arg6: memref<32x8xf32, #tpu.memory_space<vmem>>, %arg7: memref<1x8xf32, #tpu.memory_space<vmem>>, %arg8: memref<8x8xf32, #tpu.memory_space<vmem>>) attributes {dimension_semantics = [#tpu.dimension_semantics<parallel>], iteration_bounds = array<i64: 1>, scalar_prefetch = 0 : i64, scratch_operands = 0 : i64, tpu.core_type = #tpu.core_type<tc>, window_params = [{transform_indices = @transform_0, window_bounds = array<i64: 8, 16>}, {pipeline_mode = #tpu.pipeline_mode<synchronous>, transform_indices = @transform_1, window_bounds = array<i64: 16, 32>}, {pipeline_mode = #tpu.pipeline_mode<synchronous>, transform_indices = @transform_2, window_bounds = array<i64: 1, 32>}, {pipeline_mode = #tpu.pipeline_mode<synchronous>, transform_indices = @transform_3, window_bounds = array<i64: 32, 32>}, {pipeline_mode = #tpu.pipeline_mode<synchronous>, transform_indices = @transform_4, window_bounds = array<i64: 1, 32>}, {pipeline_mode = #tpu.pipeline_mode<synchronous>, transform_indices = @transform_5, window_bounds = array<i64: 32, 8>}, {pipeline_mode = #tpu.pipeline_mode<synchronous>, transform_indices = @transform_6, window_bounds = array<i64: 1, 8>}, {transform_indices = @transform_7, window_bounds = array<i64: 8, 8>}]} {
    %c0 = arith.constant 0 : index
    %c0_0 = arith.constant 0 : index
    %0 = vector.load %arg1[%c0, %c0_0] : memref<8x16xf32, #tpu.memory_space<vmem>>, vector<8x16xf32>
    %c0_1 = arith.constant 0 : index
    %c0_2 = arith.constant 0 : index
    %1 = vector.load %arg2[%c0_1, %c0_2] : memref<16x32xf32, #tpu.memory_space<vmem>>, vector<16x32xf32>
    %cst = arith.constant dense<0.000000e+00> : vector<8x32xf32>
    %2 = tpu.matmul %0, %1, %cst {dimension_numbers = #tpu.dot_dimension_numbers<[1], [0], [0], [1], [0, 0, 1, 1], [], []>} : vector<8x16xf32>, vector<16x32xf32>, vector<8x32xf32> -> vector<8x32xf32>
    %c0_3 = arith.constant 0 : index
    %c0_4 = arith.constant 0 : index
    %3 = vector.load %arg3[%c0_3, %c0_4] : memref<1x32xf32, #tpu.memory_space<vmem>>, vector<1x32xf32>
    %4 = vector.broadcast %3 : vector<1x32xf32> to vector<8x32xf32>
    %5 = arith.addf %2, %4 : vector<8x32xf32>
    %cst_5 = arith.constant 0.000000e+00 : f32
    %6 = vector.broadcast %cst_5 : f32 to vector<8x32xf32>
    %7 = arith.maximumf %5, %6 : vector<8x32xf32>
    %c0_6 = arith.constant 0 : index
    %c0_7 = arith.constant 0 : index
    %8 = vector.load %arg4[%c0_6, %c0_7] : memref<32x32xf32, #tpu.memory_space<vmem>>, vector<32x32xf32>
    %cst_8 = arith.constant dense<0.000000e+00> : vector<8x32xf32>
    %9 = tpu.matmul %7, %8, %cst_8 {dimension_numbers = #tpu.dot_dimension_numbers<[1], [0], [0], [1], [0, 0, 1, 1], [], []>} : vector<8x32xf32>, vector<32x32xf32>, vector<8x32xf32> -> vector<8x32xf32>
    %c0_9 = arith.constant 0 : index
    %c0_10 = arith.constant 0 : index
    %10 = vector.load %arg5[%c0_9, %c0_10] : memref<1x32xf32, #tpu.memory_space<vmem>>, vector<1x32xf32>
    %11 = vector.broadcast %10 : vector<1x32xf32> to vector<8x32xf32>
    %12 = arith.addf %9, %11 : vector<8x32xf32>
    %cst_11 = arith.constant 0.000000e+00 : f32
    %13 = vector.broadcast %cst_11 : f32 to vector<8x32xf32>
    %14 = arith.maximumf %12, %13 : vector<8x32xf32>
    %c0_12 = arith.constant 0 : index
    %c0_13 = arith.constant 0 : index
    %15 = vector.load %arg6[%c0_12, %c0_13] : memref<32x8xf32, #tpu.memory_space<vmem>>, vector<32x8xf32>
    %cst_14 = arith.constant dense<0.000000e+00> : vector<8x8xf32>
    %16 = tpu.matmul %14, %15, %cst_14 {dimension_numbers = #tpu.dot_dimension_numbers<[1], [0], [0], [1], [0, 0, 1, 1], [], []>} : vector<8x32xf32>, vector<32x8xf32>, vector<8x8xf32> -> vector<8x8xf32>
    %c0_15 = arith.constant 0 : index
    %c0_16 = arith.constant 0 : index
    %17 = vector.load %arg7[%c0_15, %c0_16] : memref<1x8xf32, #tpu.memory_space<vmem>>, vector<1x8xf32>
    %18 = vector.broadcast %17 : vector<1x8xf32> to vector<8x8xf32>
    %19 = arith.addf %16, %18 : vector<8x8xf32>
    %20 = tpu.iota {dimensions = array<i32: 1>} : vector<8x8xi32>
    %c4_i32 = arith.constant 4 : i32
    %21 = vector.broadcast %c4_i32 : i32 to vector<8x8xi32>
    %22 = arith.cmpi sge, %20, %21 : vector<8x8xi32>
    %cst_17 = arith.constant -2.000000e+01 : f32
    %cst_18 = arith.constant 2.000000e+00 : f32
    %23 = vector.broadcast %cst_17 : f32 to vector<8x8xf32>
    %24 = arith.maximumf %23, %19 : vector<8x8xf32>
    %25 = vector.broadcast %cst_18 : f32 to vector<8x8xf32>
    %26 = arith.minimumf %25, %24 : vector<8x8xf32>
    %27 = math.exp %26 : vector<8x8xf32>
    %28 = arith.select %22, %27, %19 : vector<8x8xi1>, vector<8x8xf32>
    %c0_19 = arith.constant 0 : index
    %c0_20 = arith.constant 0 : index
    %29 = vector.load %arg8[%c0_19, %c0_20] : memref<8x8xf32, #tpu.memory_space<vmem>>, vector<8x8xf32>
    tpu.vector_store %arg8[%c0_19, %c0_20], %28 {strides = array<i32>} : memref<8x8xf32, #tpu.memory_space<vmem>>, vector<8x8xf32>,
    return
  }
  func.func @transform_0(%arg0: i32) -> (i32, i32) {
    %c0_i32 = arith.constant 0 : i32
    %c0_i32_0 = arith.constant 0 : i32
    return %arg0, %c0_i32 : i32, i32
  }
  func.func @transform_1(%arg0: i32) -> (i32, i32) {
    %c0_i32 = arith.constant 0 : i32
    %c0_i32_0 = arith.constant 0 : i32
    %c0_i32_1 = arith.constant 0 : i32
    return %c0_i32, %c0_i32_0 : i32, i32
  }
  func.func @transform_2(%arg0: i32) -> (i32, i32) {
    %c0_i32 = arith.constant 0 : i32
    %c0_i32_0 = arith.constant 0 : i32
    %c0_i32_1 = arith.constant 0 : i32
    return %c0_i32, %c0_i32_0 : i32, i32
  }
  func.func @transform_3(%arg0: i32) -> (i32, i32) {
    %c0_i32 = arith.constant 0 : i32
    %c0_i32_0 = arith.constant 0 : i32
    %c0_i32_1 = arith.constant 0 : i32
    return %c0_i32, %c0_i32_0 : i32, i32
  }
  func.func @transform_4(%arg0: i32) -> (i32, i32) {
    %c0_i32 = arith.constant 0 : i32
    %c0_i32_0 = arith.constant 0 : i32
    %c0_i32_1 = arith.constant 0 : i32
    return %c0_i32, %c0_i32_0 : i32, i32
  }
  func.func @transform_5(%arg0: i32) -> (i32, i32) {
    %c0_i32 = arith.constant 0 : i32
    %c0_i32_0 = arith.constant 0 : i32
    %c0_i32_1 = arith.constant 0 : i32
    return %c0_i32, %c0_i32_0 : i32, i32
  }
  func.func @transform_6(%arg0: i32) -> (i32, i32) {
    %c0_i32 = arith.constant 0 : i32
    %c0_i32_0 = arith.constant 0 : i32
    %c0_i32_1 = arith.constant 0 : i32
    return %c0_i32, %c0_i32_0 : i32, i32
  }
  func.func @transform_7(%arg0: i32) -> (i32, i32) {
    %c0_i32 = arith.constant 0 : i32
    %c0_i32_0 = arith.constant 0 : i32
    return %arg0, %c0_i32 : i32, i32
  }
}

</mosaic_0001>

<llo_original>
// kernel: tpu_custom_call.1
$region0: #{tpu_custom_call.1}
  #allocation0 [shape = 'u32[]', space=smem, size = 0x4, offset = 0x4, fixed_abs, tag = 'smem constant byte address 0x4 - core index']
  #allocation1 [shape = 'u32[72,128]{1,0:T(1,128)}', space=vmem, size = 0x9000, scoped, tag = 'internal scratch']
  %s0 = inlined_call_operand.vmem [shape: f32[8,16], index: 0, kind: input, shape index: {}]
  %s1 = inlined_call_operand.hbm [shape: f32[16,32], index: 1, kind: input, shape index: {}]
  %s2 = inlined_call_operand.vmem [shape: f32[1,32], index: 2, kind: input, shape index: {}]
  %s3 = inlined_call_operand.vmem [shape: f32[32,32], index: 3, kind: input, shape index: {}]
  %s4 = inlined_call_operand.vmem [shape: f32[1,32], index: 4, kind: input, shape index: {}]
  %s5 = inlined_call_operand.vmem [shape: f32[32,8], index: 5, kind: input, shape index: {}]
  %s6 = inlined_call_operand.vmem [shape: f32[1,8], index: 6, kind: input, shape index: {}]
  %s7 = inlined_call_operand.hbm [shape: f32[8,8], index: 7, kind: output, shape index: {}]
  %s8 = sld [smem:[#allocation0]]
  $region42: #{tpu_custom_call.1} parent=0
    _
  %s10 = ssub.s32 1, %s8
  %s11 = scalar_select 0, %s10, %s8
  $region1: #{tpu_custom_call.1} parent=0
    #allocation2 [shape = 'u8[8192]{0}', space=vmem, size = 0x2000, scoped, tag = 'input window, operand 1, single buffered']
    #allocation3 [shape = 's32[1]{0}', space=sflag, size = 0x4, scoped, tag = 'scoped memory for tpu_custom_call.1']
    #allocation4 [shape = 's32[1]{0}', space=sflag, size = 0x4, scoped, tag = 'scoped memory for tpu_custom_call.1']
    #allocation5 [shape = 'u8[4096]{0}', space=vmem, size = 0x1000, scoped, tag = 'output window, operand 0, single buffered']
    %12 = vsyncpa [#allocation3], 0
    %13 = vsyncpa [#allocation4], 0
    // Predicated region
    $region2: #{tpu_custom_call.1} parent=1 // pred_check
      _
    $region3: #{tpu_custom_call.1} parent=1 // pred_check_branch
      %15 = sbr.rel (0) target = $region5
    $region4: #{tpu_custom_call.1} parent=1 // pred_region
      _
    $region5: #{tpu_custom_call.1} parent=1 // pred_fallthru
      _
    // Predicated region
    $region6: #{tpu_custom_call.1} parent=1 // pred_check
      _
    $region7: #{tpu_custom_call.1} parent=1 // pred_check_branch
      %17 = sbr.rel (0) target = $region9
    $region8: #{tpu_custom_call.1} parent=1 // pred_region
      %19 = vsyncadd [#allocation3], 0
      %s20 = sshll.u32 %s1, 4
      %s21 = int_to_ptr.hbm [resolvable:$true] %s20
      %s22 = sshll.u32 [#allocation2], 4
      %s23 = int_to_ptr.vmem [resolvable:$true] %s22
      %28 = dma.hbm_to_vmem [thread:$0]  %s21, 256, %s23, [#allocation3], 128, 128, 8
    $region9: #{tpu_custom_call.1} parent=1 // pred_fallthru
      _
    // Predicated region
    $region10: #{tpu_custom_call.1} parent=1 // pred_check
      _
    $region11: #{tpu_custom_call.1} parent=1 // pred_check_branch
      %30 = sbr.rel (0) target = $region13
    $region12: #{tpu_custom_call.1} parent=1 // pred_region
      _
    $region13: #{tpu_custom_call.1} parent=1 // pred_fallthru
      _
    // Predicated region
    $region14: #{tpu_custom_call.1} parent=1 // pred_check
      _
    $region15: #{tpu_custom_call.1} parent=1 // pred_check_branch
      %32 = sbr.rel (0) target = $region17
    $region16: #{tpu_custom_call.1} parent=1 // pred_region
      _
    $region17: #{tpu_custom_call.1} parent=1 // pred_fallthru
      _
    // Predicated region
    $region18: #{tpu_custom_call.1} parent=1 // pred_check
      _
    $region19: #{tpu_custom_call.1} parent=1 // pred_check_branch
      %34 = sbr.rel (0) target = $region21
    $region20: #{tpu_custom_call.1} parent=1 // pred_region
      _
    $region21: #{tpu_custom_call.1} parent=1 // pred_fallthru
      _
    // Predicated region
    $region22: #{tpu_custom_call.1} parent=1 // pred_check
      _
    $region23: #{tpu_custom_call.1} parent=1 // pred_check_branch
      %36 = sbr.rel (0) target = $region25
    $region24: #{tpu_custom_call.1} parent=1 // pred_region
      _
    $region25: #{tpu_custom_call.1} parent=1 // pred_fallthru
      _
    // Predicated region
    $region26: #{tpu_custom_call.1} parent=1 // pred_check
      _
    $region27: #{tpu_custom_call.1} parent=1 // pred_check_branch
      %38 = sbr.rel (0) target = $region29
    $region28: #{tpu_custom_call.1} parent=1 // pred_region
      _
    $region29: #{tpu_custom_call.1} parent=1 // pred_fallthru
      _
    // Predicated region
    $region30: #{tpu_custom_call.1} parent=1 // pred_check
      _
    $region31: #{tpu_custom_call.1} parent=1 // pred_check_branch
      %40 = sbr.rel (0) target = $region33
    $region32: #{tpu_custom_call.1} parent=1 // pred_region
      %42 = dma.done [#allocation3], 256
    $region33: #{tpu_custom_call.1} parent=1 // pred_fallthru
      _
    %v43 = vld [vmem:[%s0] sm:$0xff]
    %v44 = vld [vmem:[#allocation2] sm:$0xff]
    %v45 = vld [vmem:[#allocation2 + $0x8] sm:$0xff]
    %v46 = vld [vmem:[%s2] sm:$0x1]
    %v48 = vperm.slane %v46, 0
    %vm50 = vcmask 130048
    %v52 = vsel %vm50, %v43, 0
    %54 = vmatpush.msra.mxu0 0.0
    %55 = vmatpush.msra.mxu0 0.0
    %56 = vmatpush.msra.mxu0 0.0
    %57 = vmatpush.msra.mxu0 0.0
    %58 = vmatpush.msra.mxu0 0.0
    %59 = vmatpush.msra.mxu0 0.0
    %60 = vmatpush.msra.mxu0 0.0
    %61 = vmatpush.msra.mxu0 0.0
    %62 = vmatpush.msra.mxu0 0.0
    %63 = vmatpush.msra.mxu0 0.0
    %64 = vmatpush.msra.mxu0 0.0
    %65 = vmatpush.msra.mxu0 0.0
    %66 = vmatpush.msra.mxu0 0.0
    %67 = vmatpush.msra.mxu0 0.0
    %68 = vmatpush.msra.mxu0 %v45
    %69 = vmatpush.msra.mxu0 %v44
    %70 = vmatmul.f32.gmra.mxu0 %v52
    %v71 = vpop.f32.mrf.mxu0
    %v72 = vadd.f32 %v48, %v71
    %73 = vdwg.mxu0
    %v74 = vmax.f32 %v72, 0.0
    %v75 = vld [vmem:[%s3] sm:$0xff]
    %v76 = vld [vmem:[%s3 + $0x8] sm:$0xff]
    %v77 = vld [vmem:[%s3 + $0x10] sm:$0xff]
    %v78 = vld [vmem:[%s3 + $0x18] sm:$0xff]
    %v79 = vld [vmem:[%s4] sm:$0x1]
    %v81 = vperm.slane %v79, 0
    %vm83 = vcmask 261120
    %v85 = vsel %vm83, %v74, 0
    %87 = vmatpush.msra.mxu0 0.0
    %88 = vmatpush.msra.mxu0 0.0
    %89 = vmatpush.msra.mxu0 0.0
    %90 = vmatpush.msra.mxu0 0.0
    %91 = vmatpush.msra.mxu0 0.0
    %92 = vmatpush.msra.mxu0 0.0
    %93 = vmatpush.msra.mxu0 0.0
    %94 = vmatpush.msra.mxu0 0.0
    %95 = vmatpush.msra.mxu0 0.0
    %96 = vmatpush.msra.mxu0 0.0
    %97 = vmatpush.msra.mxu0 0.0
    %98 = vmatpush.msra.mxu0 0.0
    %99 = vmatpush.msra.mxu0 %v78
    %100 = vmatpush.msra.mxu0 %v77
    %101 = vmatpush.msra.mxu0 %v76
    %102 = vmatpush.msra.mxu0 %v75
    %103 = vmatmul.f32.gmra.mxu0 %v85
    %v104 = vpop.f32.mrf.mxu0
    %v105 = vadd.f32 %v81, %v104
    %106 = vdwg.mxu0
    %v107 = vmax.f32 %v105, 0.0
    %v108 = vld [vmem:[%s5] sm:$0xff]
    %v109 = vld [vmem:[%s5 + $0x8] sm:$0xff]
    %v110 = vld [vmem:[%s5 + $0x10] sm:$0xff]
    %v111 = vld [vmem:[%s5 + $0x18] sm:$0xff]
    %v112 = vld [vmem:[%s6] sm:$0x1]
    %v114 = vperm.slane %v112, 0
    %v117 = vsel %vm83, %v107, 0
    %119 = vmatpush.msra.mxu0 0.0
    %120 = vmatpush.msra.mxu0 0.0
    %121 = vmatpush.msra.mxu0 0.0
    %122 = vmatpush.msra.mxu0 0.0
    %123 = vmatpush.msra.mxu0 0.0
    %124 = vmatpush.msra.mxu0 0.0
    %125 = vmatpush.msra.mxu0 0.0
    %126 = vmatpush.msra.mxu0 0.0
    %127 = vmatpush.msra.mxu0 0.0
    %128 = vmatpush.msra.mxu0 0.0
    %129 = vmatpush.msra.mxu0 0.0
    %130 = vmatpush.msra.mxu0 0.0
    %131 = vmatpush.msra.mxu0 %v111
    %132 = vmatpush.msra.mxu0 %v110
    %133 = vmatpush.msra.mxu0 %v109
    %134 = vmatpush.msra.mxu0 %v108
    %135 = vmatmul.f32.gmra.mxu0 %v117
    %v136 = vpop.f32.mrf.mxu0
    %v137 = vadd.f32 %v114, %v136
    %138 = vdwg.mxu0
    %v139 = vlaneseq
    %v140 = vand.u32 %v139, 127
    %vm141 = vcmp.ge.s32.totalorder %v140, 4
    %v142 = vmax.f32 %v137, -20.0
    %v143 = vmin.f32 %v142, 2.0
    %v144 = vmul.f32 %v143, 1.442695
    %v145 = vpow.pop %v144
    %v146 = vsel %vm141, %v145, %v137
    %vm147 = vcmask 64512
    %148 = vst.msk [vmem:[#allocation5] sm:$0xff] %vm147, %v146
    // Predicated region
    $region34: #{tpu_custom_call.1} parent=1 // pred_check
      _
    $region35: #{tpu_custom_call.1} parent=1 // pred_check_branch
      %150 = sbr.rel (0) target = $region37
    $region36: #{tpu_custom_call.1} parent=1 // pred_region
      %152 = vsyncadd [#allocation4], 0
      %s154 = sshll.u32 [#allocation5], 4
      %s155 = int_to_ptr.vmem [resolvable:$true] %s154
      %s156 = sshll.u32 %s7, 4
      %s157 = int_to_ptr.hbm [resolvable:$true] %s156
      %159 = dma.vmem_to_hbm [thread:$0]  %s155, 128, %s157, [#allocation4]
    $region37: #{tpu_custom_call.1} parent=1 // pred_fallthru
      _
    // Predicated region
    $region38: #{tpu_custom_call.1} parent=1 // pred_check
      _
    $region39: #{tpu_custom_call.1} parent=1 // pred_check_branch
      %161 = sbr.rel (0) target = $region41
    $region40: #{tpu_custom_call.1} parent=1 // pred_region
      %163 = dma.done [#allocation4], 128
    $region41: #{tpu_custom_call.1} parent=1 // pred_fallthru
      _
    %164 = vsyncpa [#allocation3], 1
    %165 = vsyncpa [#allocation4], 1

// kernel: tpu_custom_call.1
$region0: #{tpu_custom_call.1}
  #allocation0 [shape = 'u32[]', space=smem, size = 0x4, offset = 0x4, fixed_abs, tag = 'smem constant byte address 0x4 - core index']
  #allocation1 [shape = 'u32[72,128]{1,0:T(1,128)}', space=vmem, size = 0x9000, scoped, tag = 'internal scratch']
  %s0 = inlined_call_operand.vmem [shape: f32[8,16], index: 0, kind: input, shape index: {}]
  %s1 = inlined_call_operand.hbm [shape: f32[16,32], index: 1, kind: input, shape index: {}]
  %s2 = inlined_call_operand.vmem [shape: f32[1,32], index: 2, kind: input, shape index: {}]
  %s3 = inlined_call_operand.vmem [shape: f32[32,32], index: 3, kind: input, shape index: {}]
  %s4 = inlined_call_operand.vmem [shape: f32[1,32], index: 4, kind: input, shape index: {}]
  %s5 = inlined_call_operand.vmem [shape: f32[32,8], index: 5, kind: input, shape index: {}]
  %s6 = inlined_call_operand.vmem [shape: f32[1,8], index: 6, kind: input, shape index: {}]
  %s7 = inlined_call_operand.hbm [shape: f32[8,8], index: 7, kind: output, shape index: {}]
  %s8 = sld [smem:[#allocation0]]
  $region42: #{tpu_custom_call.1} parent=0
    _
  %s10 = ssub.s32 1, %s8
  %s11 = scalar_select 0, %s10, %s8
  $region1: #{tpu_custom_call.1} parent=0
    #allocation2 [shape = 'u8[8192]{0}', space=vmem, size = 0x2000, scoped, tag = 'input window, operand 1, single buffered']
    #allocation3 [shape = 's32[1]{0}', space=sflag, size = 0x4, scoped, tag = 'scoped memory for tpu_custom_call.1']
    #allocation4 [shape = 's32[1]{0}', space=sflag, size = 0x4, scoped, tag = 'scoped memory for tpu_custom_call.1']
    #allocation5 [shape = 'u8[4096]{0}', space=vmem, size = 0x1000, scoped, tag = 'output window, operand 0, single buffered']
    %12 = vsyncpa [#allocation3], 0
    %13 = vsyncpa [#allocation4], 0
    // Predicated region
    $region2: #{tpu_custom_call.1} parent=1 // pred_check
      _
    $region3: #{tpu_custom_call.1} parent=1 // pred_check_branch
      %15 = sbr.rel (0) target = $region5
    $region4: #{tpu_custom_call.1} parent=1 // pred_region
      _
    $region5: #{tpu_custom_call.1} parent=1 // pred_fallthru
      _
    // Predicated region
    $region6: #{tpu_custom_call.1} parent=1 // pred_check
      _
    $region7: #{tpu_custom_call.1} parent=1 // pred_check_branch
      %17 = sbr.rel (0) target = $region9
    $region8: #{tpu_custom_call.1} parent=1 // pred_region
      %19 = vsyncadd [#allocation3], 0
      %s20 = sshll.u32 %s1, 4
      %s21 = int_to_ptr.hbm [resolvable:$true] %s20
      %s22 = sshll.u32 [#allocation2], 4
      %s23 = int_to_ptr.vmem [resolvable:$true] %s22
      %28 = dma.hbm_to_vmem [thread:$0]  %s21, 256, %s23, [#allocation3], 128, 128, 8
    $region9: #{tpu_custom_call.1} parent=1 // pred_fallthru
      _
    // Predicated region
    $region10: #{tpu_custom_call.1} parent=1 // pred_check
      _
    $region11: #{tpu_custom_call.1} parent=1 // pred_check_branch
      %30 = sbr.rel (0) target = $region13
    $region12: #{tpu_custom_call.1} parent=1 // pred_region
      _
    $region13: #{tpu_custom_call.1} parent=1 // pred_fallthru
      _
    // Predicated region
    $region14: #{tpu_custom_call.1} parent=1 // pred_check
      _
    $region15: #{tpu_custom_call.1} parent=1 // pred_check_branch
      %32 = sbr.rel (0) target = $region17
    $region16: #{tpu_custom_call.1} parent=1 // pred_region
      _
    $region17: #{tpu_custom_call.1} parent=1 // pred_fallthru
      _
    // Predicated region
    $region18: #{tpu_custom_call.1} parent=1 // pred_check
      _
    $region19: #{tpu_custom_call.1} parent=1 // pred_check_branch
      %34 = sbr.rel (0) target = $region21
    $region20: #{tpu_custom_call.1} parent=1 // pred_region
      _
    $region21: #{tpu_custom_call.1} parent=1 // pred_fallthru
      _
    // Predicated region
    $region22: #{tpu_custom_call.1} parent=1 // pred_check
      _
    $region23: #{tpu_custom_call.1} parent=1 // pred_check_branch
      %36 = sbr.rel (0) target = $region25
    $region24: #{tpu_custom_call.1} parent=1 // pred_region
      _
    $region25: #{tpu_custom_call.1} parent=1 // pred_fallthru
      _
    // Predicated region
    $region26: #{tpu_custom_call.1} parent=1 // pred_check
      _
    $region27: #{tpu_custom_call.1} parent=1 // pred_check_branch
      %38 = sbr.rel (0) target = $region29
    $region28: #{tpu_custom_call.1} parent=1 // pred_region
      _
    $region29: #{tpu_custom_call.1} parent=1 // pred_fallthru
      _
    // Predicated region
    $region30: #{tpu_custom_call.1} parent=1 // pred_check
      _
    $region31: #{tpu_custom_call.1} parent=1 // pred_check_branch
      %40 = sbr.rel (0) target = $region33
    $region32: #{tpu_custom_call.1} parent=1 // pred_region
      %42 = dma.done [#allocation3], 256
    $region33: #{tpu_custom_call.1} parent=1 // pred_fallthru
      _
    %v43 = vld [vmem:[%s0] sm:$0xff]
    %v44 = vld [vmem:[#allocation2] sm:$0xff]
    %v45 = vld [vmem:[#allocation2 + $0x8] sm:$0xff]
    %v46 = vld [vmem:[%s2] sm:$0x1]
    %v48 = vperm.slane %v46, 0
    %vm50 = vcmask 130048
    %v52 = vsel %vm50, %v43, 0
    %54 = vmatpush.msra.mxu0 0.0
    %55 = vmatpush.msra.mxu0 0.0
    %56 = vmatpush.msra.mxu0 0.0
    %57 = vmatpush.msra.mxu0 0.0
    %58 = vmatpush.msra.mxu0 0.0
    %59 = vmatpush.msra.mxu0 0.0
    %60 = vmatpush.msra.mxu0 0.0
    %61 = vmatpush.msra.mxu0 0.0
    %62 = vmatpush.msra.mxu0 0.0
    %63 = vmatpush.msra.mxu0 0.0
    %64 = vmatpush.msra.mxu0 0.0
    %65 = vmatpush.msra.mxu0 0.0
    %66 = vmatpush.msra.mxu0 0.0
    %67 = vmatpush.msra.mxu0 0.0
    %68 = vmatpush.msra.mxu0 %v45
    %69 = vmatpush.msra.mxu0 %v44
    %70 = vmatmul.f32.gmra.mxu0 %v52
    %v71 = vpop.f32.mrf.mxu0
    %v72 = vadd.f32 %v48, %v71
    %73 = vdwg.mxu0
    %v74 = vmax.f32 %v72, 0.0
    %v75 = vld [vmem:[%s3] sm:$0xff]
    %v76 = vld [vmem:[%s3 + $0x8] sm:$0xff]
    %v77 = vld [vmem:[%s3 + $0x10] sm:$0xff]
    %v78 = vld [vmem:[%s3 + $0x18] sm:$0xff]
    %v79 = vld [vmem:[%s4] sm:$0x1]
    %v81 = vperm.slane %v79, 0
    %vm83 = vcmask 261120
    %v85 = vsel %vm83, %v74, 0
    %87 = vmatpush.msra.mxu0 0.0
    %88 = vmatpush.msra.mxu0 0.0
    %89 = vmatpush.msra.mxu0 0.0
    %90 = vmatpush.msra.mxu0 0.0
    %91 = vmatpush.msra.mxu0 0.0
    %92 = vmatpush.msra.mxu0 0.0
    %93 = vmatpush.msra.mxu0 0.0
    %94 = vmatpush.msra.mxu0 0.0
    %95 = vmatpush.msra.mxu0 0.0
    %96 = vmatpush.msra.mxu0 0.0
    %97 = vmatpush.msra.mxu0 0.0
    %98 = vmatpush.msra.mxu0 0.0
    %99 = vmatpush.msra.mxu0 %v78
    %100 = vmatpush.msra.mxu0 %v77
    %101 = vmatpush.msra.mxu0 %v76
    %102 = vmatpush.msra.mxu0 %v75
    %103 = vmatmul.f32.gmra.mxu0 %v85
    %v104 = vpop.f32.mrf.mxu0
    %v105 = vadd.f32 %v81, %v104
    %106 = vdwg.mxu0
    %v107 = vmax.f32 %v105, 0.0
    %v108 = vld [vmem:[%s5] sm:$0xff]
    %v109 = vld [vmem:[%s5 + $0x8] sm:$0xff]
    %v110 = vld [vmem:[%s5 + $0x10] sm:$0xff]
    %v111 = vld [vmem:[%s5 + $0x18] sm:$0xff]
    %v112 = vld [vmem:[%s6] sm:$0x1]
    %v114 = vperm.slane %v112, 0
    %v117 = vsel %vm83, %v107, 0
    %119 = vmatpush.msra.mxu0 0.0
    %120 = vmatpush.msra.mxu0 0.0
    %121 = vmatpush.msra.mxu0 0.0
    %122 = vmatpush.msra.mxu0 0.0
    %123 = vmatpush.msra.mxu0 0.0
    %124 = vmatpush.msra.mxu0 0.0
    %125 = vmatpush.msra.mxu0 0.0
    %126 = vmatpush.msra.mxu0 0.0
    %127 = vmatpush.msra.mxu0 0.0
    %128 = vmatpush.msra.mxu0 0.0
    %129 = vmatpush.msra.mxu0 0.0
    %130 = vmatpush.msra.mxu0 0.0
    %131 = vmatpush.msra.mxu0 %v111
    %132 = vmatpush.msra.mxu0 %v110
    %133 = vmatpush.msra.mxu0 %v109
    %134 = vmatpush.msra.mxu0 %v108
    %135 = vmatmul.f32.gmra.mxu0 %v117
    %v136 = vpop.f32.mrf.mxu0
    %v137 = vadd.f32 %v114, %v136
    %138 = vdwg.mxu0
    %v139 = vlaneseq
    %v140 = vand.u32 %v139, 127
    %vm141 = vcmp.ge.s32.totalorder %v140, 4
    %v142 = vmax.f32 %v137, -20.0
    %v143 = vmin.f32 %v142, 2.0
    %v144 = vmul.f32 %v143, 1.442695
    %v145 = vpow.pop %v144
    %v146 = vsel %vm141, %v145, %v137
    %vm147 = vcmask 64512
    %148 = vst.msk [vmem:[#allocation5] sm:$0xff] %vm147, %v146
    // Predicated region
    $region34: #{tpu_custom_call.1} parent=1 // pred_check
      _
    $region35: #{tpu_custom_call.1} parent=1 // pred_check_branch
      %150 = sbr.rel (0) target = $region37
    $region36: #{tpu_custom_call.1} parent=1 // pred_region
      %152 = vsyncadd [#allocation4], 0
      %s154 = sshll.u32 [#allocation5], 4
      %s155 = int_to_ptr.vmem [resolvable:$true] %s154
      %s156 = sshll.u32 %s7, 4
      %s157 = int_to_ptr.hbm [resolvable:$true] %s156
      %159 = dma.vmem_to_hbm [thread:$0]  %s155, 128, %s157, [#allocation4]
    $region37: #{tpu_custom_call.1} parent=1 // pred_fallthru
      _
    // Predicated region
    $region38: #{tpu_custom_call.1} parent=1 // pred_check
      _
    $region39: #{tpu_custom_call.1} parent=1 // pred_check_branch
      %161 = sbr.rel (0) target = $region41
    $region40: #{tpu_custom_call.1} parent=1 // pred_region
      %163 = dma.done [#allocation4], 128
    $region41: #{tpu_custom_call.1} parent=1 // pred_fallthru
      _
    %164 = vsyncpa [#allocation3], 1
    %165 = vsyncpa [#allocation4], 1

</llo_original>
